<compile_context>
chip_gen: v5e
topology: v5e:2x2
jax: 0.10.0
libtpu: 0.0.40
codegen_flags: <defaults>
</compile_context>

<pallas_src>
import jax
import jax.numpy as jnp
from jax.experimental import pallas as pl
from jax.experimental.pallas import tpu as pltpu


def _shifted(x, s, lane, L):
    """out[..., t] = x[..., t + s], zero-filled outside [0, L).  `s` is static."""
    if s == 0:
        return x
    r = pltpu.roll(x, shift=(-s) % L, axis=1)          # circular lane roll (XLU)
    if s > 0:
        return jnp.where(lane < L - s, r, 0.0)         # zero the wrapped tail
    return jnp.where(lane >= -s, r, 0.0)               # zero the wrapped head


def rrcnn_kernel(x_ref, w1_ref, b1_ref, w2f_ref, b2_ref, out_ref):
    """One batch row per grid step.

    x_ref   : (1, L)       input row (channel dim squeezed by BlockSpec)
    w1_ref  : (C, K)       first conv weight
    b1_ref  : (C, 1)       first conv bias
    w2f_ref : (8, C*K)     second conv weight, k-major flattened in row 0, rows 1..7 zero
    b2_ref  : (1, 1)       second conv bias
    out_ref : (1, L)       output row
    """
    C, K = w1_ref.shape
    _, L = x_ref.shape
    P = K // 2

    xrow = x_ref[...]                                              # (1, L)
    w1 = w1_ref[...]                                               # (C, K)

    # ---- conv1 + bias + ReLU:  h[c, t] = relu(sum_k w1[c, k] * x[t + k - P] + b1[c]) ----
    lane1 = jax.lax.broadcasted_iota(jnp.int32, (1, L), 1)
    acc = jnp.zeros((C, L), jnp.float32)
    for k in range(K):                                             # K static FMAs on a (C, L) tile
        xs = _shifted(xrow, k - P, lane1, L)                       # (1, L) zero-padded shift
        acc = acc + w1[:, k:k + 1] * xs                            # (C,1)*(1,L) -> (C,L)
    h = jnp.maximum(acc + b1_ref[...], 0.0)                        # (C, L)

    # ---- conv2 on the MXU:  out[t] = sum_{k,c} w2[c, k] * h[c, t + k - P] + b2 ----
    # im2col: hwin[k*C + c, t] = h[c, t + k - P]   (aligned sublane concat of (C, L) blocks)
    laneC = jax.lax.broadcasted_iota(jnp.int32, (C, L), 1)
    hwin = jnp.concatenate([_shifted(h, k - P, laneC, L) for k in range(K)], axis=0)  # (K*C, L)

    y8 = jnp.dot(w2f_ref[...], hwin, preferred_element_type=jnp.float32)              # (8, L)
    out_ref[...] = y8[0:1, :] + b2_ref[...]                        # row 0 holds the real filter


def rrcnn_forward(x, w1, b1, w2, b2):
    """x: (B, 1, L) float32 -> (B, L) float32, matching RRCNNLayer.forward."""
    B, cin, L = x.shape
    assert cin == 1
    C, K = w1.shape
    assert K % 2 == 1, "padding=K//2 preserves length only for odd K (module default K=15)"

    # k-major flattened second conv weight: index k*C + c -> w2[c, k]; pad to 8 rows so the
    # MXU matmul has a non-degenerate M dimension (rows 1..7 are zero and discarded).
    w2t_flat = jnp.transpose(w2).reshape(1, C * K)
    w2f_pad = jnp.concatenate([w2t_flat, jnp.zeros((7, C * K), jnp.float32)], axis=0)
    b1c = b1.reshape(C, 1)
    b2c = b2.reshape(1, 1)

    out3 = pl.pallas_call(
        rrcnn_kernel,
        out_shape=jax.ShapeDtypeStruct((B, 1, L), jnp.float32),
        grid=(B,),
        in_specs=[
            pl.BlockSpec((None, 1, L), lambda b: (b, 0, 0)),   # one batch row of x
            pl.BlockSpec((C, K), lambda b: (0, 0)),            # w1
            pl.BlockSpec((C, 1), lambda b: (0, 0)),            # b1
            pl.BlockSpec((8, C * K), lambda b: (0, 0)),        # w2 (k-major flat, padded rows)
            pl.BlockSpec((1, 1), lambda b: (0, 0)),            # b2
        ],
        out_specs=pl.BlockSpec((None, 1, L), lambda b: (b, 0, 0)),
        compiler_params=pltpu.CompilerParams(
            dimension_semantics=("parallel",)),                # v7x: batch rows across 2 TCs
    )(x, w1, b1c, w2f_pad, b2c)
    return out3[:, 0, :]
    # TODO(synk): for very long sequences, add a lane-aligned L grid with K-1 halos
    # (element-offset BlockSpecs) so tiles double-buffer instead of holding all of L.


def ref_forward(x, w1, b1, w2, b2):
    """Pure-JAX reference (XLA conv == cross-correlation, same as PyTorch Conv1d)."""
    C, K = w1.shape
    P = K // 2
    dn = ("NCH", "OIH", "NCH")
    h = jax.lax.conv_general_dilated(x, w1[:, None, :], (1,), [(P, P)],
                                     dimension_numbers=dn)
    h = jax.nn.relu(h + b1[None, :, None])
    y = jax.lax.conv_general_dilated(h, w2[None, :, :], (1,), [(P, P)],
                                     dimension_numbers=dn)
    y = y + b2[None, :, None]
    return y[:, 0, :]


if __name__ == "__main__":
    B, L = 2, 128
    C, K = 16, 15          # conv_channels=16, kernel_size=15 (module defaults)

    key = jax.random.PRNGKey(0)
    kx, k1, k2, k3, k4 = jax.random.split(key, 5)

    # Deterministic init mimicking PyTorch Conv1d default U[-1/sqrt(fan_in), +1/sqrt(fan_in)].
    bound1 = 1.0 / jnp.sqrt(1.0 * K)        # conv:     fan_in = 1 * K
    bound2 = 1.0 / jnp.sqrt(1.0 * C * K)    # out_conv: fan_in = C * K
    w1 = jax.random.uniform(k1, (C, K), jnp.float32, -bound1, bound1)
    b1 = jax.random.uniform(k2, (C,), jnp.float32, -bound1, bound1)
    w2 = jax.random.uniform(k3, (C, K), jnp.float32, -bound2, bound2)
    b2 = jax.random.uniform(k4, (1,), jnp.float32, -bound2, bound2)

    x = jax.random.normal(kx, (B, 1, L), jnp.float32)

    out = jax.block_until_ready(rrcnn_forward(x, w1, b1, w2, b2))
    ref = jax.block_until_ready(ref_forward(x, w1, b1, w2, b2))

    assert out.shape == (B, L)
    assert jnp.allclose(out, ref, atol=5e-3, rtol=5e-3), \
        f"mismatch: max abs err = {jnp.max(jnp.abs(out - ref))}"

    print("KERNEL_OK")
</pallas_src>

<mosaic_0001>
module attributes {stable_mosaic.version = 11 : i64} {
  func.func @rrcnn_kernel(%arg0: i32, %arg1: memref<1x1x128xf32, #tpu.memory_space<vmem>>, %arg2: memref<16x15xf32, #tpu.memory_space<vmem>>, %arg3: memref<16x1xf32, #tpu.memory_space<vmem>>, %arg4: memref<8x240xf32, #tpu.memory_space<vmem>>, %arg5: memref<1x1xf32, #tpu.memory_space<vmem>>, %arg6: memref<1x1x128xf32, #tpu.memory_space<vmem>>) attributes {dimension_semantics = [#tpu.dimension_semantics<parallel>], iteration_bounds = array<i64: 2>, scalar_prefetch = 0 : i64, scratch_operands = 0 : i64, tpu.core_type = #tpu.core_type<tc>, window_params = [{transform_indices = @transform_0, window_bounds = array<i64: 1, 1, 128>}, {pipeline_mode = #tpu.pipeline_mode<synchronous>, transform_indices = @transform_1, window_bounds = array<i64: 16, 15>}, {pipeline_mode = #tpu.pipeline_mode<synchronous>, transform_indices = @transform_2, window_bounds = array<i64: 16, 1>}, {pipeline_mode = #tpu.pipeline_mode<synchronous>, transform_indices = @transform_3, window_bounds = array<i64: 8, 240>}, {pipeline_mode = #tpu.pipeline_mode<synchronous>, transform_indices = @transform_4, window_bounds = array<i64: 1, 1>}, {transform_indices = @transform_5, window_bounds = array<i64: 1, 1, 128>}]} {
    %c0 = arith.constant 0 : index
    %c0_0 = arith.constant 0 : index
    %c0_1 = arith.constant 0 : index
    %0 = vector.load %arg1[%c0, %c0_0, %c0_1] : memref<1x1x128xf32, #tpu.memory_space<vmem>>, vector<1x1x128xf32>
    %1 = vector.shape_cast %0 : vector<1x1x128xf32> to vector<1x128xf32>
    %c0_2 = arith.constant 0 : index
    %c0_3 = arith.constant 0 : index
    %2 = vector.load %arg2[%c0_2, %c0_3] : memref<16x15xf32, #tpu.memory_space<vmem>>, vector<16x15xf32>
    %3 = tpu.iota {dimensions = array<i32: 1>} : vector<1x128xi32>
    %cst = arith.constant 0.000000e+00 : f32
    %4 = vector.broadcast %cst : f32 to vector<16x128xf32>
    %c7_i32 = arith.constant 7 : i32
    %5 = tpu.dynamic_rotate %1 by %c7_i32 dim 1 : vector<1x128xf32>, i32 -> vector<1x128xf32>
    %c7_i32_4 = arith.constant 7 : i32
    %6 = vector.broadcast %c7_i32_4 : i32 to vector<1x128xi32>
    %7 = arith.cmpi sge, %3, %6 : vector<1x128xi32>
    %cst_5 = arith.constant 0.000000e+00 : f32
    %8 = vector.broadcast %cst_5 : f32 to vector<1x128xf32>
    %9 = arith.select %7, %5, %8 : vector<1x128xi1>, vector<1x128xf32>
    %10 = vector.extract_strided_slice %2 {offsets = [0, 0], sizes = [16, 1], strides = [1, 1]} : vector<16x15xf32> to vector<16x1xf32>
    %11 = vector.broadcast %10 : vector<16x1xf32> to vector<16x128xf32>
    %12 = vector.broadcast %9 : vector<1x128xf32> to vector<16x128xf32>
    %13 = arith.mulf %11, %12 : vector<16x128xf32>
    %14 = arith.addf %4, %13 : vector<16x128xf32>
    %c6_i32 = arith.constant 6 : i32
    %15 = tpu.dynamic_rotate %1 by %c6_i32 dim 1 : vector<1x128xf32>, i32 -> vector<1x128xf32>
    %c6_i32_6 = arith.constant 6 : i32
    %16 = vector.broadcast %c6_i32_6 : i32 to vector<1x128xi32>
    %17 = arith.cmpi sge, %3, %16 : vector<1x128xi32>
    %cst_7 = arith.constant 0.000000e+00 : f32
    %18 = vector.broadcast %cst_7 : f32 to vector<1x128xf32>
    %19 = arith.select %17, %15, %18 : vector<1x128xi1>, vector<1x128xf32>
    %20 = vector.extract_strided_slice %2 {offsets = [0, 1], sizes = [16, 1], strides = [1, 1]} : vector<16x15xf32> to vector<16x1xf32>
    %21 = vector.broadcast %20 : vector<16x1xf32> to vector<16x128xf32>
    %22 = vector.broadcast %19 : vector<1x128xf32> to vector<16x128xf32>
    %23 = arith.mulf %21, %22 : vector<16x128xf32>
    %24 = arith.addf %14, %23 : vector<16x128xf32>
    %c5_i32 = arith.constant 5 : i32
    %25 = tpu.dynamic_rotate %1 by %c5_i32 dim 1 : vector<1x128xf32>, i32 -> vector<1x128xf32>
    %c5_i32_8 = arith.constant 5 : i32
    %26 = vector.broadcast %c5_i32_8 : i32 to vector<1x128xi32>
    %27 = arith.cmpi sge, %3, %26 : vector<1x128xi32>
    %cst_9 = arith.constant 0.000000e+00 : f32
    %28 = vector.broadcast %cst_9 : f32 to vector<1x128xf32>
    %29 = arith.select %27, %25, %28 : vector<1x128xi1>, vector<1x128xf32>
    %30 = vector.extract_strided_slice %2 {offsets = [0, 2], sizes = [16, 1], strides = [1, 1]} : vector<16x15xf32> to vector<16x1xf32>
    %31 = vector.broadcast %30 : vector<16x1xf32> to vector<16x128xf32>
    %32 = vector.broadcast %29 : vector<1x128xf32> to vector<16x128xf32>
    %33 = arith.mulf %31, %32 : vector<16x128xf32>
    %34 = arith.addf %24, %33 : vector<16x128xf32>
    %c4_i32 = arith.constant 4 : i32
    %35 = tpu.dynamic_rotate %1 by %c4_i32 dim 1 : vector<1x128xf32>, i32 -> vector<1x128xf32>
    %c4_i32_10 = arith.constant 4 : i32
    %36 = vector.broadcast %c4_i32_10 : i32 to vector<1x128xi32>
    %37 = arith.cmpi sge, %3, %36 : vector<1x128xi32>
    %cst_11 = arith.constant 0.000000e+00 : f32
    %38 = vector.broadcast %cst_11 : f32 to vector<1x128xf32>
    %39 = arith.select %37, %35, %38 : vector<1x128xi1>, vector<1x128xf32>
    %40 = vector.extract_strided_slice %2 {offsets = [0, 3], sizes = [16, 1], strides = [1, 1]} : vector<16x15xf32> to vector<16x1xf32>
    %41 = vector.broadcast %40 : vector<16x1xf32> to vector<16x128xf32>
    %42 = vector.broadcast %39 : vector<1x128xf32> to vector<16x128xf32>
    %43 = arith.mulf %41, %42 : vector<16x128xf32>
    %44 = arith.addf %34, %43 : vector<16x128xf32>
    %c3_i32 = arith.constant 3 : i32
    %45 = tpu.dynamic_rotate %1 by %c3_i32 dim 1 : vector<1x128xf32>, i32 -> vector<1x128xf32>
    %c3_i32_12 = arith.constant 3 : i32
    %46 = vector.broadcast %c3_i32_12 : i32 to vector<1x128xi32>
    %47 = arith.cmpi sge, %3, %46 : vector<1x128xi32>
    %cst_13 = arith.constant 0.000000e+00 : f32
    %48 = vector.broadcast %cst_13 : f32 to vector<1x128xf32>
    %49 = arith.select %47, %45, %48 : vector<1x128xi1>, vector<1x128xf32>
    %50 = vector.extract_strided_slice %2 {offsets = [0, 4], sizes = [16, 1], strides = [1, 1]} : vector<16x15xf32> to vector<16x1xf32>
    %51 = vector.broadcast %50 : vector<16x1xf32> to vector<16x128xf32>
    %52 = vector.broadcast %49 : vector<1x128xf32> to vector<16x128xf32>
    %53 = arith.mulf %51, %52 : vector<16x128xf32>
    %54 = arith.addf %44, %53 : vector<16x128xf32>
    %c2_i32 = arith.constant 2 : i32
    %55 = tpu.dynamic_rotate %1 by %c2_i32 dim 1 : vector<1x128xf32>, i32 -> vector<1x128xf32>
    %c2_i32_14 = arith.constant 2 : i32
    %56 = vector.broadcast %c2_i32_14 : i32 to vector<1x128xi32>
    %57 = arith.cmpi sge, %3, %56 : vector<1x128xi32>
    %cst_15 = arith.constant 0.000000e+00 : f32
    %58 = vector.broadcast %cst_15 : f32 to vector<1x128xf32>
    %59 = arith.select %57, %55, %58 : vector<1x128xi1>, vector<1x128xf32>
    %60 = vector.extract_strided_slice %2 {offsets = [0, 5], sizes = [16, 1], strides = [1, 1]} : vector<16x15xf32> to vector<16x1xf32>
    %61 = vector.broadcast %60 : vector<16x1xf32> to vector<16x128xf32>
    %62 = vector.broadcast %59 : vector<1x128xf32> to vector<16x128xf32>
    %63 = arith.mulf %61, %62 : vector<16x128xf32>
    %64 = arith.addf %54, %63 : vector<16x128xf32>
    %c1_i32 = arith.constant 1 : i32
    %65 = tpu.dynamic_rotate %1 by %c1_i32 dim 1 : vector<1x128xf32>, i32 -> vector<1x128xf32>
    %c1_i32_16 = arith.constant 1 : i32
    %66 = vector.broadcast %c1_i32_16 : i32 to vector<1x128xi32>
    %67 = arith.cmpi sge, %3, %66 : vector<1x128xi32>
    %cst_17 = arith.constant 0.000000e+00 : f32
    %68 = vector.broadcast %cst_17 : f32 to vector<1x128xf32>
    %69 = arith.select %67, %65, %68 : vector<1x128xi1>, vector<1x128xf32>
    %70 = vector.extract_strided_slice %2 {offsets = [0, 6], sizes = [16, 1], strides = [1, 1]} : vector<16x15xf32> to vector<16x1xf32>
    %71 = vector.broadcast %70 : vector<16x1xf32> to vector<16x128xf32>
    %72 = vector.broadcast %69 : vector<1x128xf32> to vector<16x128xf32>
    %73 = arith.mulf %71, %72 : vector<16x128xf32>
    %74 = arith.addf %64, %73 : vector<16x128xf32>
    %75 = vector.extract_strided_slice %2 {offsets = [0, 7], sizes = [16, 1], strides = [1, 1]} : vector<16x15xf32> to vector<16x1xf32>
    %76 = vector.broadcast %75 : vector<16x1xf32> to vector<16x128xf32>
    %77 = vector.broadcast %1 : vector<1x128xf32> to vector<16x128xf32>
    %78 = arith.mulf %76, %77 : vector<16x128xf32>
    %79 = arith.addf %74, %78 : vector<16x128xf32>
    %c127_i32 = arith.constant 127 : i32
    %80 = tpu.dynamic_rotate %1 by %c127_i32 dim 1 : vector<1x128xf32>, i32 -> vector<1x128xf32>
    %c127_i32_18 = arith.constant 127 : i32
    %81 = vector.broadcast %c127_i32_18 : i32 to vector<1x128xi32>
    %82 = arith.cmpi slt, %3, %81 : vector<1x128xi32>
    %cst_19 = arith.constant 0.000000e+00 : f32
    %83 = vector.broadcast %cst_19 : f32 to vector<1x128xf32>
    %84 = arith.select %82, %80, %83 : vector<1x128xi1>, vector<1x128xf32>
    %85 = vector.extract_strided_slice %2 {offsets = [0, 8], sizes = [16, 1], strides = [1, 1]} : vector<16x15xf32> to vector<16x1xf32>
    %86 = vector.broadcast %85 : vector<16x1xf32> to vector<16x128xf32>
    %87 = vector.broadcast %84 : vector<1x128xf32> to vector<16x128xf32>
    %88 = arith.mulf %86, %87 : vector<16x128xf32>
    %89 = arith.addf %79, %88 : vector<16x128xf32>
    %c126_i32 = arith.constant 126 : i32
    %90 = tpu.dynamic_rotate %1 by %c126_i32 dim 1 : vector<1x128xf32>, i32 -> vector<1x128xf32>
    %c126_i32_20 = arith.constant 126 : i32
    %91 = vector.broadcast %c126_i32_20 : i32 to vector<1x128xi32>
    %92 = arith.cmpi slt, %3, %91 : vector<1x128xi32>
    %cst_21 = arith.constant 0.000000e+00 : f32
    %93 = vector.broadcast %cst_21 : f32 to vector<1x128xf32>
    %94 = arith.select %92, %90, %93 : vector<1x128xi1>, vector<1x128xf32>
    %95 = vector.extract_strided_slice %2 {offsets = [0, 9], sizes = [16, 1], strides = [1, 1]} : vector<16x15xf32> to vector<16x1xf32>
    %96 = vector.broadcast %95 : vector<16x1xf32> to vector<16x128xf32>
    %97 = vector.broadcast %94 : vector<1x128xf32> to vector<16x128xf32>
    %98 = arith.mulf %96, %97 : vector<16x128xf32>
    %99 = arith.addf %89, %98 : vector<16x128xf32>
    %c125_i32 = arith.constant 125 : i32
    %100 = tpu.dynamic_rotate %1 by %c125_i32 dim 1 : vector<1x128xf32>, i32 -> vector<1x128xf32>
    %c125_i32_22 = arith.constant 125 : i32
    %101 = vector.broadcast %c125_i32_22 : i32 to vector<1x128xi32>
    %102 = arith.cmpi slt, %3, %101 : vector<1x128xi32>
    %cst_23 = arith.constant 0.000000e+00 : f32
    %103 = vector.broadcast %cst_23 : f32 to vector<1x128xf32>
    %104 = arith.select %102, %100, %103 : vector<1x128xi1>, vector<1x128xf32>
    %105 = vector.extract_strided_slice %2 {offsets = [0, 10], sizes = [16, 1], strides = [1, 1]} : vector<16x15xf32> to vector<16x1xf32>
    %106 = vector.broadcast %105 : vector<16x1xf32> to vector<16x128xf32>
    %107 = vector.broadcast %104 : vector<1x128xf32> to vector<16x128xf32>
    %108 = arith.mulf %106, %107 : vector<16x128xf32>
    %109 = arith.addf %99, %108 : vector<16x128xf32>
    %c124_i32 = arith.constant 124 : i32
    %110 = tpu.dynamic_rotate %1 by %c124_i32 dim 1 : vector<1x128xf32>, i32 -> vector<1x128xf32>
    %c124_i32_24 = arith.constant 124 : i32
    %111 = vector.broadcast %c124_i32_24 : i32 to vector<1x128xi32>
    %112 = arith.cmpi slt, %3, %111 : vector<1x128xi32>
    %cst_25 = arith.constant 0.000000e+00 : f32
    %113 = vector.broadcast %cst_25 : f32 to vector<1x128xf32>
    %114 = arith.select %112, %110, %113 : vector<1x128xi1>, vector<1x128xf32>
    %115 = vector.extract_strided_slice %2 {offsets = [0, 11], sizes = [16, 1], strides = [1, 1]} : vector<16x15xf32> to vector<16x1xf32>
    %116 = vector.broadcast %115 : vector<16x1xf32> to vector<16x128xf32>
    %117 = vector.broadcast %114 : vector<1x128xf32> to vector<16x128xf32>
    %118 = arith.mulf %116, %117 : vector<16x128xf32>
    %119 = arith.addf %109, %118 : vector<16x128xf32>
    %c123_i32 = arith.constant 123 : i32
    %120 = tpu.dynamic_rotate %1 by %c123_i32 dim 1 : vector<1x128xf32>, i32 -> vector<1x128xf32>
    %c123_i32_26 = arith.constant 123 : i32
    %121 = vector.broadcast %c123_i32_26 : i32 to vector<1x128xi32>
    %122 = arith.cmpi slt, %3, %121 : vector<1x128xi32>
    %cst_27 = arith.constant 0.000000e+00 : f32
    %123 = vector.broadcast %cst_27 : f32 to vector<1x128xf32>
    %124 = arith.select %122, %120, %123 : vector<1x128xi1>, vector<1x128xf32>
    %125 = vector.extract_strided_slice %2 {offsets = [0, 12], sizes = [16, 1], strides = [1, 1]} : vector<16x15xf32> to vector<16x1xf32>
    %126 = vector.broadcast %125 : vector<16x1xf32> to vector<16x128xf32>
    %127 = vector.broadcast %124 : vector<1x128xf32> to vector<16x128xf32>
    %128 = arith.mulf %126, %127 : vector<16x128xf32>
    %129 = arith.addf %119, %128 : vector<16x128xf32>
    %c122_i32 = arith.constant 122 : i32
    %130 = tpu.dynamic_rotate %1 by %c122_i32 dim 1 : vector<1x128xf32>, i32 -> vector<1x128xf32>
    %c122_i32_28 = arith.constant 122 : i32
    %131 = vector.broadcast %c122_i32_28 : i32 to vector<1x128xi32>
    %132 = arith.cmpi slt, %3, %131 : vector<1x128xi32>
    %cst_29 = arith.constant 0.000000e+00 : f32
    %133 = vector.broadcast %cst_29 : f32 to vector<1x128xf32>
    %134 = arith.select %132, %130, %133 : vector<1x128xi1>, vector<1x128xf32>
    %135 = vector.extract_strided_slice %2 {offsets = [0, 13], sizes = [16, 1], strides = [1, 1]} : vector<16x15xf32> to vector<16x1xf32>
    %136 = vector.broadcast %135 : vector<16x1xf32> to vector<16x128xf32>
    %137 = vector.broadcast %134 : vector<1x128xf32> to vector<16x128xf32>
    %138 = arith.mulf %136, %137 : vector<16x128xf32>
    %139 = arith.addf %129, %138 : vector<16x128xf32>
    %c121_i32 = arith.constant 121 : i32
    %140 = tpu.dynamic_rotate %1 by %c121_i32 dim 1 : vector<1x128xf32>, i32 -> vector<1x128xf32>
    %c121_i32_30 = arith.constant 121 : i32
    %141 = vector.broadcast %c121_i32_30 : i32 to vector<1x128xi32>
    %142 = arith.cmpi slt, %3, %141 : vector<1x128xi32>
    %cst_31 = arith.constant 0.000000e+00 : f32
    %143 = vector.broadcast %cst_31 : f32 to vector<1x128xf32>
    %144 = arith.select %142, %140, %143 : vector<1x128xi1>, vector<1x128xf32>
    %145 = vector.extract_strided_slice %2 {offsets = [0, 14], sizes = [16, 1], strides = [1, 1]} : vector<16x15xf32> to vector<16x1xf32>
    %146 = vector.broadcast %145 : vector<16x1xf32> to vector<16x128xf32>
    %147 = vector.broadcast %144 : vector<1x128xf32> to vector<16x128xf32>
    %148 = arith.mulf %146, %147 : vector<16x128xf32>
    %149 = arith.addf %139, %148 : vector<16x128xf32>
    %c0_32 = arith.constant 0 : index
    %c0_33 = arith.constant 0 : index
    %150 = vector.load %arg3[%c0_32, %c0_33] : memref<16x1xf32, #tpu.memory_space<vmem>>, vector<16x1xf32>
    %151 = vector.broadcast %150 : vector<16x1xf32> to vector<16x128xf32>
    %152 = arith.addf %149, %151 : vector<16x128xf32>
    %cst_34 = arith.constant 0.000000e+00 : f32
    %153 = vector.broadcast %cst_34 : f32 to vector<16x128xf32>
    %154 = arith.maximumf %152, %153 : vector<16x128xf32>
    %155 = tpu.iota {dimensions = array<i32: 1>} : vector<16x128xi32>
    %c7_i32_35 = arith.constant 7 : i32
    %156 = tpu.dynamic_rotate %154 by %c7_i32_35 dim 1 : vector<16x128xf32>, i32 -> vector<16x128xf32>
    %c7_i32_36 = arith.constant 7 : i32
    %157 = vector.broadcast %c7_i32_36 : i32 to vector<16x128xi32>
    %158 = arith.cmpi sge, %155, %157 : vector<16x128xi32>
    %cst_37 = arith.constant 0.000000e+00 : f32
    %159 = vector.broadcast %cst_37 : f32 to vector<16x128xf32>
    %160 = arith.select %158, %156, %159 : vector<16x128xi1>, vector<16x128xf32>
    %c6_i32_38 = arith.constant 6 : i32
    %161 = tpu.dynamic_rotate %154 by %c6_i32_38 dim 1 : vector<16x128xf32>, i32 -> vector<16x128xf32>
    %c6_i32_39 = arith.constant 6 : i32
    %162 = vector.broadcast %c6_i32_39 : i32 to vector<16x128xi32>
    %163 = arith.cmpi sge, %155, %162 : vector<16x128xi32>
    %cst_40 = arith.constant 0.000000e+00 : f32
    %164 = vector.broadcast %cst_40 : f32 to vector<16x128xf32>
    %165 = arith.select %163, %161, %164 : vector<16x128xi1>, vector<16x128xf32>
    %c5_i32_41 = arith.constant 5 : i32
    %166 = tpu.dynamic_rotate %154 by %c5_i32_41 dim 1 : vector<16x128xf32>, i32 -> vector<16x128xf32>
    %c5_i32_42 = arith.constant 5 : i32
    %167 = vector.broadcast %c5_i32_42 : i32 to vector<16x128xi32>
    %168 = arith.cmpi sge, %155, %167 : vector<16x128xi32>
    %cst_43 = arith.constant 0.000000e+00 : f32
    %169 = vector.broadcast %cst_43 : f32 to vector<16x128xf32>
    %170 = arith.select %168, %166, %169 : vector<16x128xi1>, vector<16x128xf32>
    %c4_i32_44 = arith.constant 4 : i32
    %171 = tpu.dynamic_rotate %154 by %c4_i32_44 dim 1 : vector<16x128xf32>, i32 -> vector<16x128xf32>
    %c4_i32_45 = arith.constant 4 : i32
    %172 = vector.broadcast %c4_i32_45 : i32 to vector<16x128xi32>
    %173 = arith.cmpi sge, %155, %172 : vector<16x128xi32>
    %cst_46 = arith.constant 0.000000e+00 : f32
    %174 = vector.broadcast %cst_46 : f32 to vector<16x128xf32>
    %175 = arith.select %173, %171, %174 : vector<16x128xi1>, vector<16x128xf32>
    %c3_i32_47 = arith.constant 3 : i32
    %176 = tpu.dynamic_rotate %154 by %c3_i32_47 dim 1 : vector<16x128xf32>, i32 -> vector<16x128xf32>
    %c3_i32_48 = arith.constant 3 : i32
    %177 = vector.broadcast %c3_i32_48 : i32 to vector<16x128xi32>
    %178 = arith.cmpi sge, %155, %177 : vector<16x128xi32>
    %cst_49 = arith.constant 0.000000e+00 : f32
    %179 = vector.broadcast %cst_49 : f32 to vector<16x128xf32>
    %180 = arith.select %178, %176, %179 : vector<16x128xi1>, vector<16x128xf32>
    %c2_i32_50 = arith.constant 2 : i32
    %181 = tpu.dynamic_rotate %154 by %c2_i32_50 dim 1 : vector<16x128xf32>, i32 -> vector<16x128xf32>
    %c2_i32_51 = arith.constant 2 : i32
    %182 = vector.broadcast %c2_i32_51 : i32 to vector<16x128xi32>
    %183 = arith.cmpi sge, %155, %182 : vector<16x128xi32>
    %cst_52 = arith.constant 0.000000e+00 : f32
    %184 = vector.broadcast %cst_52 : f32 to vector<16x128xf32>
    %185 = arith.select %183, %181, %184 : vector<16x128xi1>, vector<16x128xf32>
    %c1_i32_53 = arith.constant 1 : i32
    %186 = tpu.dynamic_rotate %154 by %c1_i32_53 dim 1 : vector<16x128xf32>, i32 -> vector<16x128xf32>
    %c1_i32_54 = arith.constant 1 : i32
    %187 = vector.broadcast %c1_i32_54 : i32 to vector<16x128xi32>
    %188 = arith.cmpi sge, %155, %187 : vector<16x128xi32>
    %cst_55 = arith.constant 0.000000e+00 : f32
    %189 = vector.broadcast %cst_55 : f32 to vector<16x128xf32>
    %190 = arith.select %188, %186, %189 : vector<16x128xi1>, vector<16x128xf32>
    %c127_i32_56 = arith.constant 127 : i32
    %191 = tpu.dynamic_rotate %154 by %c127_i32_56 dim 1 : vector<16x128xf32>, i32 -> vector<16x128xf32>
    %c127_i32_57 = arith.constant 127 : i32
    %192 = vector.broadcast %c127_i32_57 : i32 to vector<16x128xi32>
    %193 = arith.cmpi slt, %155, %192 : vector<16x128xi32>
    %cst_58 = arith.constant 0.000000e+00 : f32
    %194 = vector.broadcast %cst_58 : f32 to vector<16x128xf32>
    %195 = arith.select %193, %191, %194 : vector<16x128xi1>, vector<16x128xf32>
    %c126_i32_59 = arith.constant 126 : i32
    %196 = tpu.dynamic_rotate %154 by %c126_i32_59 dim 1 : vector<16x128xf32>, i32 -> vector<16x128xf32>
    %c126_i32_60 = arith.constant 126 : i32
    %197 = vector.broadcast %c126_i32_60 : i32 to vector<16x128xi32>
    %198 = arith.cmpi slt, %155, %197 : vector<16x128xi32>
    %cst_61 = arith.constant 0.000000e+00 : f32
    %199 = vector.broadcast %cst_61 : f32 to vector<16x128xf32>
    %200 = arith.select %198, %196, %199 : vector<16x128xi1>, vector<16x128xf32>
    %c125_i32_62 = arith.constant 125 : i32
    %201 = tpu.dynamic_rotate %154 by %c125_i32_62 dim 1 : vector<16x128xf32>, i32 -> vector<16x128xf32>
    %c125_i32_63 = arith.constant 125 : i32
    %202 = vector.broadcast %c125_i32_63 : i32 to vector<16x128xi32>
    %203 = arith.cmpi slt, %155, %202 : vector<16x128xi32>
    %cst_64 = arith.constant 0.000000e+00 : f32
    %204 = vector.broadcast %cst_64 : f32 to vector<16x128xf32>
    %205 = arith.select %203, %201, %204 : vector<16x128xi1>, vector<16x128xf32>
    %c124_i32_65 = arith.constant 124 : i32
    %206 = tpu.dynamic_rotate %154 by %c124_i32_65 dim 1 : vector<16x128xf32>, i32 -> vector<16x128xf32>
    %c124_i32_66 = arith.constant 124 : i32
    %207 = vector.broadcast %c124_i32_66 : i32 to vector<16x128xi32>
    %208 = arith.cmpi slt, %155, %207 : vector<16x128xi32>
    %cst_67 = arith.constant 0.000000e+00 : f32
    %209 = vector.broadcast %cst_67 : f32 to vector<16x128xf32>
    %210 = arith.select %208, %206, %209 : vector<16x128xi1>, vector<16x128xf32>
    %c123_i32_68 = arith.constant 123 : i32
    %211 = tpu.dynamic_rotate %154 by %c123_i32_68 dim 1 : vector<16x128xf32>, i32 -> vector<16x128xf32>
    %c123_i32_69 = arith.constant 123 : i32
    %212 = vector.broadcast %c123_i32_69 : i32 to vector<16x128xi32>
    %213 = arith.cmpi slt, %155, %212 : vector<16x128xi32>
    %cst_70 = arith.constant 0.000000e+00 : f32
    %214 = vector.broadcast %cst_70 : f32 to vector<16x128xf32>
    %215 = arith.select %213, %211, %214 : vector<16x128xi1>, vector<16x128xf32>
    %c122_i32_71 = arith.constant 122 : i32
    %216 = tpu.dynamic_rotate %154 by %c122_i32_71 dim 1 : vector<16x128xf32>, i32 -> vector<16x128xf32>
    %c122_i32_72 = arith.constant 122 : i32
    %217 = vector.broadcast %c122_i32_72 : i32 to vector<16x128xi32>
    %218 = arith.cmpi slt, %155, %217 : vector<16x128xi32>
    %cst_73 = arith.constant 0.000000e+00 : f32
    %219 = vector.broadcast %cst_73 : f32 to vector<16x128xf32>
    %220 = arith.select %218, %216, %219 : vector<16x128xi1>, vector<16x128xf32>
    %c121_i32_74 = arith.constant 121 : i32
    %221 = tpu.dynamic_rotate %154 by %c121_i32_74 dim 1 : vector<16x128xf32>, i32 -> vector<16x128xf32>
    %c121_i32_75 = arith.constant 121 : i32
    %222 = vector.broadcast %c121_i32_75 : i32 to vector<16x128xi32>
    %223 = arith.cmpi slt, %155, %222 : vector<16x128xi32>
    %cst_76 = arith.constant 0.000000e+00 : f32
    %224 = vector.broadcast %cst_76 : f32 to vector<16x128xf32>
    %225 = arith.select %223, %221, %224 : vector<16x128xi1>, vector<16x128xf32>
    %226 = tpu.concatenate %160, %165, %170, %175, %180, %185, %190, %154, %195, %200, %205, %210, %215, %220, %225 in 0 : vector<16x128xf32>, vector<16x128xf32>, vector<16x128xf32>, vector<16x128xf32>, vector<16x128xf32>, vector<16x128xf32>, vector<16x128xf32>, vector<16x128xf32>, vector<16x128xf32>, vector<16x128xf32>, vector<16x128xf32>, vector<16x128xf32>, vector<16x128xf32>, vector<16x128xf32>, vector<16x128xf32> -> vector<240x128xf32>
    %c0_77 = arith.constant 0 : index
    %c0_78 = arith.constant 0 : index
    %227 = vector.load %arg4[%c0_77, %c0_78] : memref<8x240xf32, #tpu.memory_space<vmem>>, vector<8x240xf32>
    %cst_79 = arith.constant dense<0.000000e+00> : vector<8x128xf32>
    %228 = tpu.matmul %227, %226, %cst_79 {dimension_numbers = #tpu.dot_dimension_numbers<[1], [0], [0], [1], [0, 0, 1, 1], [], []>} : vector<8x240xf32>, vector<240x128xf32>, vector<8x128xf32> -> vector<8x128xf32>
    %229 = vector.extract_strided_slice %228 {offsets = [0, 0], sizes = [1, 128], strides = [1, 1]} : vector<8x128xf32> to vector<1x128xf32>
    %c0_80 = arith.constant 0 : index
    %c0_81 = arith.constant 0 : index
    %230 = vector.load %arg5[%c0_80, %c0_81] : memref<1x1xf32, #tpu.memory_space<vmem>>, vector<1x1xf32>
    %231 = vector.broadcast %230 : vector<1x1xf32> to vector<1x128xf32>
    %232 = arith.addf %229, %231 : vector<1x128xf32>
    %c0_82 = arith.constant 0 : index
    %c0_83 = arith.constant 0 : index
    %c0_84 = arith.constant 0 : index
    %233 = vector.load %arg6[%c0_82, %c0_83, %c0_84] : memref<1x1x128xf32, #tpu.memory_space<vmem>>, vector<1x1x128xf32>
    %234 = vector.shape_cast %233 : vector<1x1x128xf32> to vector<1x128xf32>
    %235 = vector.shape_cast %232 : vector<1x128xf32> to vector<1x1x128xf32>
    tpu.vector_store %arg6[%c0_82, %c0_83, %c0_84], %235 {strides = array<i32>} : memref<1x1x128xf32, #tpu.memory_space<vmem>>, vector<1x1x128xf32>,
    return
  }
  func.func @transform_0(%arg0: i32) -> (i32, i32, i32) {
    %c0_i32 = arith.constant 0 : i32
    %c0_i32_0 = arith.constant 0 : i32
    %c0_i32_1 = arith.constant 0 : i32
    return %arg0, %c0_i32, %c0_i32_0 : i32, i32, i32
  }
  func.func @transform_1(%arg0: i32) -> (i32, i32) {
    %c0_i32 = arith.constant 0 : i32
    %c0_i32_0 = arith.constant 0 : i32
    %c0_i32_1 = arith.constant 0 : i32
    return %c0_i32, %c0_i32_0 : i32, i32
  }
  func.func @transform_2(%arg0: i32) -> (i32, i32) {
    %c0_i32 = arith.constant 0 : i32
    %c0_i32_0 = arith.constant 0 : i32
    %c0_i32_1 = arith.constant 0 : i32
    return %c0_i32, %c0_i32_0 : i32, i32
  }
  func.func @transform_3(%arg0: i32) -> (i32, i32) {
    %c0_i32 = arith.constant 0 : i32
    %c0_i32_0 = arith.constant 0 : i32
    %c0_i32_1 = arith.constant 0 : i32
    return %c0_i32, %c0_i32_0 : i32, i32
  }
  func.func @transform_4(%arg0: i32) -> (i32, i32) {
    %c0_i32 = arith.constant 0 : i32
    %c0_i32_0 = arith.constant 0 : i32
    %c0_i32_1 = arith.constant 0 : i32
    return %c0_i32, %c0_i32_0 : i32, i32
  }
  func.func @transform_5(%arg0: i32) -> (i32, i32, i32) {
    %c0_i32 = arith.constant 0 : i32
    %c0_i32_0 = arith.constant 0 : i32
    %c0_i32_1 = arith.constant 0 : i32
    return %arg0, %c0_i32, %c0_i32_0 : i32, i32, i32
  }
}

</mosaic_0001>

<llo_original>
// kernel: tpu_custom_call.1
$region0: #{tpu_custom_call.1}
  #allocation0 [shape = 'u32[]', space=smem, size = 0x4, offset = 0x4, fixed_abs, tag = 'smem constant byte address 0x4 - core index']
  #allocation1 [shape = 'u32[72,128]{1,0:T(1,128)}', space=vmem, size = 0x9000, scoped, tag = 'internal scratch']
  #allocation2 [shape = 'f32[1,1]{1,0:T(1,128)S(1)}', space=vmem, size = 0x200, scoped, tag = 'scoped memory for tpu_custom_call.1']
  %s0 = inlined_call_operand.vmem [shape: f32[2,1,128], index: 0, kind: input, shape index: {}]
  %s1 = inlined_call_operand.vmem [shape: f32[16,15], index: 1, kind: input, shape index: {}]
  %s2 = inlined_call_operand.vmem [shape: f32[16,1], index: 2, kind: input, shape index: {}]
  %s3 = inlined_call_operand.hbm [shape: f32[8,240], index: 3, kind: input, shape index: {}]
  %s4 = inlined_call_operand.<no memory space> [shape: f32[1,1], index: 4, kind: input, shape index: {}]
  %s5 = inlined_call_operand.hbm [shape: f32[2,1,128], index: 5, kind: output, shape index: {}]
  %s6 = sld [smem:[#allocation0]]
  $region57: #{tpu_custom_call.1} parent=0
    _
  %s8 = ssub.s32 1, %s6
  %s9 = scalar_select 0, %s8, %s6
  %v10 = vstv %s4
  %11 = vst [vmem:[#allocation2] sm:$0x1] %v10
  $region1: #{tpu_custom_call.1} parent=0
    #allocation3 [shape = 'u8[8192]{0}', space=vmem, size = 0x2000, scoped, tag = 'input window, operand 3, single buffered']
    #allocation4 [shape = 's32[2]{0}', space=sflag, size = 0x8, scoped, tag = 'scoped memory for tpu_custom_call.1']
    #allocation5 [shape = 's32[2]{0}', space=sflag, size = 0x8, scoped, tag = 'scoped memory for tpu_custom_call.1']
    #allocation6 [shape = 'u8[1024]{0}', space=vmem, size = 0x400, scoped, tag = 'output window, operand 0']
    %12 = vsyncpa [#allocation4], 0
    %13 = vsyncpa [#allocation5], 0
    %s14 = scalar_lea.sflag [#allocation5], 1
    %15 = vsyncpa %s14, 0
    loop: start=0, step=1, limit=4
    $region2: #{tpu_custom_call.1} parent=1 // loop_pre_header
      _
    $region3: #{tpu_custom_call.1} parent=1 // loop_header
      %s17 = sphi 0, %s21
      %p18 = scmp.ge.s32.totalorder %s17, 4
      %s27 = sphi 0, %s29
      %s30 = sphi 0, %s27
      %s31 = sphi 0, %s30
      %s47 = sphi 0, %s31
      %s51 = sphi 0, %s51
      %s53 = sphi 0, %s51
      %s54 = sphi 0, %s53
      %s68 = sphi 0, %s54
      %s72 = sphi 0, %s72
      %s74 = sphi 0, %s72
      %s75 = sphi 0, %s74
      %s89 = sphi 0, %s75
      %s93 = sphi 0, %s93
      %s95 = sphi 0, %s93
      %s96 = sphi 0, %s95
      %s110 = sphi 0, %s96
      %s114 = sphi 0, %s114
      %s116 = sphi 0, %s114
      %s117 = sphi 0, %s116
      %s131 = sphi 0, %s117
      %s137 = sphi 0, %s139
      %s140 = sphi 0, %s137
      %s141 = sphi 0, %s140
      %s157 = sphi 0, %s141
    $region4: #{tpu_custom_call.1} parent=1 // loop_header_branch
      %20 = sbr.rel (%p18) target = $region8
    $region5: #{tpu_custom_call.1} parent=1 // loop_body
      %s22 = ssub.s32 %s17, 1
      %s23 = ssub.s32 %s17, 2
      %s24 = sadd.s32 %s17, 1
      %s25 = ssub.s32 %s17, %s24
      %p26 = scmp.eq.s32.totalorder %s25, 0
      %s28 = sadd.s32 %s27, 1
      %s29 = scalar_select %p26, %s27, %s28
      %p32 = pneg %p26
      %p33 = scmp.eq.s32.totalorder %s17, 1
      %p34 = por %p32, %p33
      %p35 = scmp.ne.s32.totalorder %s27, %s30
      %p36 = scmp.eq.s32.totalorder %s17, 0
      %p37 = por %p35, %p36
      %p38 = scmp.ne.s32.totalorder %s27, %s30
      %p39 = scmp.eq.s32.totalorder %s22, 1
      %p40 = por %p38, %p39
      %p41 = scmp.ne.s32.totalorder %s30, %s31
      %p42 = scmp.eq.s32.totalorder %s22, 0
      %p43 = por %p41, %p42
      %p44 = scmp.ne.s32.totalorder %s30, %s31
      %p45 = scmp.eq.s32.totalorder %s23, 1
      %p46 = por %p44, %p45
      %p48 = scmp.ne.s32.totalorder %s31, %s47
      %p49 = scmp.eq.s32.totalorder %s23, 0
      %p50 = por %p48, %p49
      %s52 = sadd.s32 %s51, 1
      %p55 = scmp.eq.s32.totalorder %s17, 1
      %p56 = scmp.ne.s32.totalorder %s51, %s53
      %p57 = scmp.eq.s32.totalorder %s17, 0
      %p58 = por %p56, %p57
      %p59 = scmp.ne.s32.totalorder %s51, %s53
      %p60 = scmp.eq.s32.totalorder %s22, 1
      %p61 = por %p59, %p60
      %p62 = scmp.ne.s32.totalorder %s53, %s54
      %p63 = scmp.eq.s32.totalorder %s22, 0
      %p64 = por %p62, %p63
      %p65 = scmp.ne.s32.totalorder %s53, %s54
      %p66 = scmp.eq.s32.totalorder %s23, 1
      %p67 = por %p65, %p66
      %p69 = scmp.ne.s32.totalorder %s54, %s68
      %p70 = scmp.eq.s32.totalorder %s23, 0
      %p71 = por %p69, %p70
      %s73 = sadd.s32 %s72, 1
      %p76 = scmp.eq.s32.totalorder %s17, 1
      %p77 = scmp.ne.s32.totalorder %s72, %s74
      %p78 = scmp.eq.s32.totalorder %s17, 0
      %p79 = por %p77, %p78
      %p80 = scmp.ne.s32.totalorder %s72, %s74
      %p81 = scmp.eq.s32.totalorder %s22, 1
      %p82 = por %p80, %p81
      %p83 = scmp.ne.s32.totalorder %s74, %s75
      %p84 = scmp.eq.s32.totalorder %s22, 0
      %p85 = por %p83, %p84
      %p86 = scmp.ne.s32.totalorder %s74, %s75
      %p87 = scmp.eq.s32.totalorder %s23, 1
      %p88 = por %p86, %p87
      %p90 = scmp.ne.s32.totalorder %s75, %s89
      %p91 = scmp.eq.s32.totalorder %s23, 0
      %p92 = por %p90, %p91
      %s94 = sadd.s32 %s93, 1
      %p97 = scmp.eq.s32.totalorder %s17, 1
      %p98 = scmp.ne.s32.totalorder %s93, %s95
      %p99 = scmp.eq.s32.totalorder %s17, 0
      %p100 = por %p98, %p99
      %p101 = scmp.ne.s32.totalorder %s93, %s95
      %p102 = scmp.eq.s32.totalorder %s22, 1
      %p103 = por %p101, %p102
      %p104 = scmp.ne.s32.totalorder %s95, %s96
      %p105 = scmp.eq.s32.totalorder %s22, 0
      %p106 = por %p104, %p105
      %p107 = scmp.ne.s32.totalorder %s95, %s96
      %p108 = scmp.eq.s32.totalorder %s23, 1
      %p109 = por %p107, %p108
      %p111 = scmp.ne.s32.totalorder %s96, %s110
      %p112 = scmp.eq.s32.totalorder %s23, 0
      %p113 = por %p111, %p112
      %s115 = sadd.s32 %s114, 1
      %p118 = scmp.eq.s32.totalorder %s17, 1
      %p119 = scmp.ne.s32.totalorder %s114, %s116
      %p120 = scmp.eq.s32.totalorder %s17, 0
      %p121 = por %p119, %p120
      %p122 = scmp.ne.s32.totalorder %s114, %s116
      %p123 = scmp.eq.s32.totalorder %s22, 1
      %p124 = por %p122, %p123
      %p125 = scmp.ne.s32.totalorder %s116, %s117
      %p126 = scmp.eq.s32.totalorder %s22, 0
      %p127 = por %p125, %p126
      %p128 = scmp.ne.s32.totalorder %s116, %s117
      %p129 = scmp.eq.s32.totalorder %s23, 1
      %p130 = por %p128, %p129
      %p132 = scmp.ne.s32.totalorder %s117, %s131
      %p133 = scmp.eq.s32.totalorder %s23, 0
      %p134 = por %p132, %p133
      %s135 = ssub.s32 %s17, %s24
      %p136 = scmp.eq.s32.totalorder %s135, 0
      %s138 = sadd.s32 %s137, 1
      %s139 = scalar_select %p136, %s137, %s138
      %p142 = pneg %p136
      %p143 = scmp.eq.s32.totalorder %s17, 1
      %p144 = por %p142, %p143
      %p145 = scmp.ne.s32.totalorder %s137, %s140
      %p146 = scmp.eq.s32.totalorder %s17, 0
      %p147 = por %p145, %p146
      %p148 = scmp.ne.s32.totalorder %s137, %s140
      %p149 = scmp.eq.s32.totalorder %s22, 1
      %p150 = por %p148, %p149
      %p151 = scmp.ne.s32.totalorder %s140, %s141
      %p152 = scmp.eq.s32.totalorder %s22, 0
      %p153 = por %p151, %p152
      %p154 = scmp.ne.s32.totalorder %s140, %s141
      %p155 = scmp.eq.s32.totalorder %s23, 1
      %p156 = por %p154, %p155
      %p158 = scmp.ne.s32.totalorder %s141, %s157
      %p159 = scmp.eq.s32.totalorder %s23, 0
      %p160 = por %p158, %p159
      %p161 = scmp.le.s32.totalorder 1, %s17
      %p162 = scmp.lt.s32.totalorder %s17, 3
      %p163 = pnand %p161, %p162
      %p164 = pneg %p163
      // Predicated region
      $region9: #{tpu_custom_call.1} parent=5 // pred_check
        _
      $region10: #{tpu_custom_call.1} parent=5 // pred_check_branch
        %166 = sbr.rel (%p163) target = $region12
      $region11: #{tpu_custom_call.1} parent=5 // pred_region
        %s167 = ssub.s32 %s17, 1
        // Predicated region
        $region13: #{tpu_custom_call.1} parent=11 // pred_check
          %p168 = pneg %p64
        $region14: #{tpu_custom_call.1} parent=11 // pred_check_branch
          %170 = sbr.rel (%p168) target = $region16
        $region15: #{tpu_custom_call.1} parent=11 // pred_region
          _
        $region16: #{tpu_custom_call.1} parent=11 // pred_fallthru
          _
        // Predicated region
        $region17: #{tpu_custom_call.1} parent=11 // pred_check
          %p171 = pneg %p85
        $region18: #{tpu_custom_call.1} parent=11 // pred_check_branch
          %173 = sbr.rel (%p171) target = $region20
        $region19: #{tpu_custom_call.1} parent=11 // pred_region
          _
        $region20: #{tpu_custom_call.1} parent=11 // pred_fallthru
          _
        // Predicated region
        $region21: #{tpu_custom_call.1} parent=11 // pred_check
          %p174 = pneg %p106
        $region22: #{tpu_custom_call.1} parent=11 // pred_check_branch
          %176 = sbr.rel (%p174) target = $region24
        $region23: #{tpu_custom_call.1} parent=11 // pred_region
          %178 = vsyncadd [#allocation4], 0
          %s180 = sshll.u32 %s3, 4
          %s181 = int_to_ptr.hbm [resolvable:$true] %s180
          %s182 = sshll.u32 [#allocation3], 4
          %s183 = int_to_ptr.vmem [resolvable:$true] %s182
          %185 = dma.hbm_to_vmem [thread:$0]  %s181, 256, %s183, [#allocation4]
        $region24: #{tpu_custom_call.1} parent=11 // pred_fallthru
          _
        // Predicated region
        $region25: #{tpu_custom_call.1} parent=11 // pred_check
          %p186 = pneg %p127
        $region26: #{tpu_custom_call.1} parent=11 // pred_check_branch
          %188 = sbr.rel (%p186) target = $region28
        $region27: #{tpu_custom_call.1} parent=11 // pred_region
          _
        $region28: #{tpu_custom_call.1} parent=11 // pred_fallthru
          _
      $region12: #{tpu_custom_call.1} parent=5 // pred_fallthru
        _
      %p189 = scmp.lt.s32.totalorder %s17, 2
      // Predicated region
      $region29: #{tpu_custom_call.1} parent=5 // pred_check
        %p190 = pneg %p189
      $region30: #{tpu_custom_call.1} parent=5 // pred_check_branch
        %192 = sbr.rel (%p190) target = $region32
      $region31: #{tpu_custom_call.1} parent=5 // pred_region
        // Predicated region
        $region33: #{tpu_custom_call.1} parent=31 // pred_check
          %p193 = pneg %p37
        $region34: #{tpu_custom_call.1} parent=31 // pred_check_branch
          %195 = sbr.rel (%p193) target = $region36
        $region35: #{tpu_custom_call.1} parent=31 // pred_region
          %p196 = scmp.lt.s32.totalorder %s17, 1
          %s197 = scalar_select %p196, %s17, 1
          %s198 = scalar_lea.vmem %s0, %s197
        $region36: #{tpu_custom_call.1} parent=31 // pred_fallthru
          _
      $region32: #{tpu_custom_call.1} parent=5 // pred_fallthru
        _
      %p199 = scmp.le.s32.totalorder 1, %s17
      %p200 = scmp.lt.s32.totalorder %s17, 3
      %p201 = pnand %p199, %p200
      %p202 = pneg %p201
      // Predicated region
      $region37: #{tpu_custom_call.1} parent=5 // pred_check
        _
      $region38: #{tpu_custom_call.1} parent=5 // pred_check_branch
        %204 = sbr.rel (%p201) target = $region40
      $region39: #{tpu_custom_call.1} parent=5 // pred_region
        %s205 = ssub.s32 %s17, 1
        // Predicated region
        $region41: #{tpu_custom_call.1} parent=39 // pred_check
          %p206 = pneg %p106
        $region42: #{tpu_custom_call.1} parent=39 // pred_check_branch
          %208 = sbr.rel (%p206) target = $region44
        $region43: #{tpu_custom_call.1} parent=39 // pred_region
          %210 = dma.done [#allocation4], 256
        $region44: #{tpu_custom_call.1} parent=39 // pred_fallthru
          _
        %p211 = scmp.lt.s32.totalorder %s22, 1
        %s212 = scalar_select %p211, %s22, 1
        %s213 = scalar_lea.vmem %s0, %s212
        %p214 = pneg %p43
        %p215 = pneg %p40
        %p216 = pneg %p64
        %p217 = pneg %p61
        %p218 = pneg %p85
        %p219 = pneg %p82
        %p220 = pneg %p106
        %p221 = pneg %p103
        %p222 = pneg %p127
        %p223 = pneg %p124
        %p224 = pneg %p153
        %p225 = pneg %p150
        %s226 = sand.u32 %s140, 1
        %s227 = scalar_lea.sflag [#allocation5], %s226
        %s228 = sand.u32 %s140, 1
        %s229 = scalar_lea.vmem [#allocation6], %s228
        %p230 = scmp.lt.s32.totalorder %s22, 1
        %s231 = scalar_select %p230, %s22, 1
        %s232 = scalar_lea.vmem %s0, %s231
        %v233 = vld [vmem:[%s232] sm:$0x1]
        %v234 = vld [vmem:[%s1] sm:$0xff]
        %v235 = vld [vmem:[%s1 + $0x8] sm:$0xff]
        %v236 = vlaneseq
        %v237 = vand.u32 %v236, 127
        %238 = vrot.lane.b32.xlu0 %v233, 7
        %v239 = vpop.permute.xlu0 %238
        %vm240 = vcmp.ge.s32.totalorder %v237, 7
        %v241 = vsel %vm240, %v239, 0.0
        %243 = vset.pattern.permute.xlu0 0
        %244 = vperm.xlu0 %243, %v234
        %v245 = vpop.permute.xlu0 %244
        %248 = vset.pattern.permute.xlu0 0
        %249 = vperm.xlu0 %248, %v235
        %v250 = vpop.permute.xlu0 %249
        %v252 = vperm.slane %v241, 0
        %v253 = vmul.f32 %v245, %v252
        %v254 = vmul.f32 %v250, %v252
        %v255 = vadd.f32 %v253, 0.0
        %v256 = vadd.f32 %v254, 0.0
        %257 = vrot.lane.b32.xlu0 %v233, 6
        %v258 = vpop.permute.xlu0 %257
        %vm259 = vcmp.ge.s32.totalorder %v237, 6
        %v260 = vsel %vm259, %v258, 0.0
        %261 = vset.pattern.permute.xlu0 1
        %262 = vperm.xlu0 %261, %v234
        %v263 = vpop.permute.xlu0 %262
        %265 = vset.pattern.permute.xlu0 1
        %266 = vperm.xlu0 %265, %v235
        %v267 = vpop.permute.xlu0 %266
        %v269 = vperm.slane %v260, 0
        %v270 = vmul.f32 %v263, %v269
        %v271 = vmul.f32 %v267, %v269
        %v272 = vadd.f32 %v255, %v270
        %v273 = vadd.f32 %v256, %v271
        %274 = vrot.lane.b32.xlu0 %v233, 5
        %v275 = vpop.permute.xlu0 %274
        %vm276 = vcmp.ge.s32.totalorder %v237, 5
        %v277 = vsel %vm276, %v275, 0.0
        %278 = vset.pattern.permute.xlu0 2
        %279 = vperm.xlu0 %278, %v234
        %v280 = vpop.permute.xlu0 %279
        %282 = vset.pattern.permute.xlu0 2
        %283 = vperm.xlu0 %282, %v235
        %v284 = vpop.permute.xlu0 %283
        %v286 = vperm.slane %v277, 0
        %v287 = vmul.f32 %v280, %v286
        %v288 = vmul.f32 %v284, %v286
        %v289 = vadd.f32 %v272, %v287
        %v290 = vadd.f32 %v273, %v288
        %291 = vrot.lane.b32.xlu0 %v233, 4
        %v292 = vpop.permute.xlu0 %291
        %vm293 = vcmp.ge.s32.totalorder %v237, 4
        %v294 = vsel %vm293, %v292, 0.0
        %295 = vset.pattern.permute.xlu0 3
        %296 = vperm.xlu0 %295, %v234
        %v297 = vpop.permute.xlu0 %296
        %299 = vset.pattern.permute.xlu0 3
        %300 = vperm.xlu0 %299, %v235
        %v301 = vpop.permute.xlu0 %300
        %v303 = vperm.slane %v294, 0
        %v304 = vmul.f32 %v297, %v303
        %v305 = vmul.f32 %v301, %v303
        %v306 = vadd.f32 %v289, %v304
        %v307 = vadd.f32 %v290, %v305
        %308 = vrot.lane.b32.xlu0 %v233, 3
        %v309 = vpop.permute.xlu0 %308
        %vm310 = vcmp.ge.s32.totalorder %v237, 3
        %v311 = vsel %vm310, %v309, 0.0
        %312 = vset.pattern.permute.xlu0 4
        %313 = vperm.xlu0 %312, %v234
        %v314 = vpop.permute.xlu0 %313
        %316 = vset.pattern.permute.xlu0 4
        %317 = vperm.xlu0 %316, %v235
        %v318 = vpop.permute.xlu0 %317
        %v320 = vperm.slane %v311, 0
        %v321 = vmul.f32 %v314, %v320
        %v322 = vmul.f32 %v318, %v320
        %v323 = vadd.f32 %v306, %v321
        %v324 = vadd.f32 %v307, %v322
        %325 = vrot.lane.b32.xlu0 %v233, 2
        %v326 = vpop.permute.xlu0 %325
        %vm327 = vcmp.ge.s32.totalorder %v237, 2
        %v328 = vsel %vm327, %v326, 0.0
        %329 = vset.pattern.permute.xlu0 5
        %330 = vperm.xlu0 %329, %v234
        %v331 = vpop.permute.xlu0 %330
        %333 = vset.pattern.permute.xlu0 5
        %334 = vperm.xlu0 %333, %v235
        %v335 = vpop.permute.xlu0 %334
        %v337 = vperm.slane %v328, 0
        %v338 = vmul.f32 %v331, %v337
        %v339 = vmul.f32 %v335, %v337
        %v340 = vadd.f32 %v323, %v338
        %v341 = vadd.f32 %v324, %v339
        %342 = vrot.lane.b32.xlu0 %v233, 1
        %v343 = vpop.permute.xlu0 %342
        %vm344 = vcmp.ge.s32.totalorder %v237, 1
        %v345 = vsel %vm344, %v343, 0.0
        %346 = vset.pattern.permute.xlu0 6
        %347 = vperm.xlu0 %346, %v234
        %v348 = vpop.permute.xlu0 %347
        %350 = vset.pattern.permute.xlu0 6
        %351 = vperm.xlu0 %350, %v235
        %v352 = vpop.permute.xlu0 %351
        %v354 = vperm.slane %v345, 0
        %v355 = vmul.f32 %v348, %v354
        %v356 = vmul.f32 %v352, %v354
        %v357 = vadd.f32 %v340, %v355
        %v358 = vadd.f32 %v341, %v356
        %359 = vset.pattern.permute.xlu0 7
        %360 = vperm.xlu0 %359, %v234
        %v361 = vpop.permute.xlu0 %360
        %363 = vset.pattern.permute.xlu0 7
        %364 = vperm.xlu0 %363, %v235
        %v365 = vpop.permute.xlu0 %364
        %v368 = vperm.slane %v233, 0
        %v370 = vmul.f32 %v361, %v368
        %v371 = vmul.f32 %v365, %v368
        %v372 = vadd.f32 %v357, %v370
        %v373 = vadd.f32 %v358, %v371
        %374 = vrot.lane.b32.xlu0 %v233, 127
        %v375 = vpop.permute.xlu0 %374
        %vm376 = vcmp.lt.s32.totalorder %v237, 127
        %v377 = vsel %vm376, %v375, 0.0
        %378 = vset.pattern.permute.xlu0 8
        %379 = vperm.xlu0 %378, %v234
        %v380 = vpop.permute.xlu0 %379
        %382 = vset.pattern.permute.xlu0 8
        %383 = vperm.xlu0 %382, %v235
        %v384 = vpop.permute.xlu0 %383
        %v386 = vperm.slane %v377, 0
        %v387 = vmul.f32 %v380, %v386
        %v388 = vmul.f32 %v384, %v386
        %v389 = vadd.f32 %v372, %v387
        %v390 = vadd.f32 %v373, %v388
        %391 = vrot.lane.b32.xlu0 %v233, 126
        %v392 = vpop.permute.xlu0 %391
        %vm393 = vcmp.lt.s32.totalorder %v237, 126
        %v394 = vsel %vm393, %v392, 0.0
        %395 = vset.pattern.permute.xlu0 9
        %396 = vperm.xlu0 %395, %v234
        %v397 = vpop.permute.xlu0 %396
        %399 = vset.pattern.permute.xlu0 9
        %400 = vperm.xlu0 %399, %v235
        %v401 = vpop.permute.xlu0 %400
        %v403 = vperm.slane %v394, 0
        %v404 = vmul.f32 %v397, %v403
        %v405 = vmul.f32 %v401, %v403
        %v406 = vadd.f32 %v389, %v404
        %v407 = vadd.f32 %v390, %v405
        %408 = vrot.lane.b32.xlu0 %v233, 125
        %v409 = vpop.permute.xlu0 %408
        %vm410 = vcmp.lt.s32.totalorder %v237, 125
        %v411 = vsel %vm410, %v409, 0.0
        %412 = vset.pattern.permute.xlu0 10
        %413 = vperm.xlu0 %412, %v234
        %v414 = vpop.permute.xlu0 %413
        %416 = vset.pattern.permute.xlu0 10
        %417 = vperm.xlu0 %416, %v235
        %v418 = vpop.permute.xlu0 %417
        %v420 = vperm.slane %v411, 0
        %v421 = vmul.f32 %v414, %v420
        %v422 = vmul.f32 %v418, %v420
        %v423 = vadd.f32 %v406, %v421
        %v424 = vadd.f32 %v407, %v422
        %425 = vrot.lane.b32.xlu0 %v233, 124
        %v426 = vpop.permute.xlu0 %425
        %vm427 = vcmp.lt.s32.totalorder %v237, 124
        %v428 = vsel %vm427, %v426, 0.0
        %429 = vset.pattern.permute.xlu0 11
        %430 = vperm.xlu0 %429, %v234
        %v431 = vpop.permute.xlu0 %430
        %433 = vset.pattern.permute.xlu0 11
        %434 = vperm.xlu0 %433, %v235
        %v435 = vpop.permute.xlu0 %434
        %v437 = vperm.slane %v428, 0
        %v438 = vmul.f32 %v431, %v437
        %v439 = vmul.f32 %v435, %v437
        %v440 = vadd.f32 %v423, %v438
        %v441 = vadd.f32 %v424, %v439
        %442 = vrot.lane.b32.xlu0 %v233, 123
        %v443 = vpop.permute.xlu0 %442
        %vm444 = vcmp.lt.s32.totalorder %v237, 123
        %v445 = vsel %vm444, %v443, 0.0
        %446 = vset.pattern.permute.xlu0 12
        %447 = vperm.xlu0 %446, %v234
        %v448 = vpop.permute.xlu0 %447
        %450 = vset.pattern.permute.xlu0 12
        %451 = vperm.xlu0 %450, %v235
        %v452 = vpop.permute.xlu0 %451
        %v454 = vperm.slane %v445, 0
        %v455 = vmul.f32 %v448, %v454
        %v456 = vmul.f32 %v452, %v454
        %v457 = vadd.f32 %v440, %v455
        %v458 = vadd.f32 %v441, %v456
        %459 = vrot.lane.b32.xlu0 %v233, 122
        %v460 = vpop.permute.xlu0 %459
        %vm461 = vcmp.lt.s32.totalorder %v237, 122
        %v462 = vsel %vm461, %v460, 0.0
        %463 = vset.pattern.permute.xlu0 13
        %464 = vperm.xlu0 %463, %v234
        %v465 = vpop.permute.xlu0 %464
        %467 = vset.pattern.permute.xlu0 13
        %468 = vperm.xlu0 %467, %v235
        %v469 = vpop.permute.xlu0 %468
        %v471 = vperm.slane %v462, 0
        %v472 = vmul.f32 %v465, %v471
        %v473 = vmul.f32 %v469, %v471
        %v474 = vadd.f32 %v457, %v472
        %v475 = vadd.f32 %v458, %v473
        %476 = vrot.lane.b32.xlu0 %v233, 121
        %v477 = vpop.permute.xlu0 %476
        %vm478 = vcmp.lt.s32.totalorder %v237, 121
        %v479 = vsel %vm478, %v477, 0.0
        %480 = vset.pattern.permute.xlu0 14
        %481 = vperm.xlu0 %480, %v234
        %v482 = vpop.permute.xlu0 %481
        %484 = vset.pattern.permute.xlu0 14
        %485 = vperm.xlu0 %484, %v235
        %v486 = vpop.permute.xlu0 %485
        %v488 = vperm.slane %v479, 0
        %v489 = vmul.f32 %v482, %v488
        %v490 = vmul.f32 %v486, %v488
        %v491 = vadd.f32 %v474, %v489
        %v492 = vadd.f32 %v475, %v490
        %v493 = vld [vmem:[%s2] sm:$0xff]
        %v494 = vld [vmem:[%s2 + $0x8] sm:$0xff]
        %496 = vset.pattern.permute.xlu0 0
        %497 = vperm.xlu0 %496, %v493
        %v498 = vpop.permute.xlu0 %497
        %501 = vset.pattern.permute.xlu0 0
        %502 = vperm.xlu0 %501, %v494
        %v503 = vpop.permute.xlu0 %502
        %v505 = vadd.f32 %v491, %v498
        %v506 = vadd.f32 %v492, %v503
        %v507 = vmax.f32 %v505, 0.0
        %v508 = vmax.f32 %v506, 0.0
        %509 = vrot.lane.b32.xlu0 %v507, 7
        %v510 = vpop.permute.xlu0 %509
        %511 = vrot.lane.b32.xlu0 %v508, 7
        %v512 = vpop.permute.xlu0 %511
        %v513 = vsel %vm240, %v510, 0.0
        %v514 = vsel %vm240, %v512, 0.0
        %515 = vrot.lane.b32.xlu0 %v507, 6
        %v516 = vpop.permute.xlu0 %515
        %517 = vrot.lane.b32.xlu0 %v508, 6
        %v518 = vpop.permute.xlu0 %517
        %v519 = vsel %vm259, %v516, 0.0
        %v520 = vsel %vm259, %v518, 0.0
        %521 = vrot.lane.b32.xlu0 %v507, 5
        %v522 = vpop.permute.xlu0 %521
        %523 = vrot.lane.b32.xlu0 %v508, 5
        %v524 = vpop.permute.xlu0 %523
        %v525 = vsel %vm276, %v522, 0.0
        %v526 = vsel %vm276, %v524, 0.0
        %527 = vrot.lane.b32.xlu0 %v507, 4
        %v528 = vpop.permute.xlu0 %527
        %529 = vrot.lane.b32.xlu0 %v508, 4
        %v530 = vpop.permute.xlu0 %529
        %v531 = vsel %vm293, %v528, 0.0
        %v532 = vsel %vm293, %v530, 0.0
        %533 = vrot.lane.b32.xlu0 %v507, 3
        %v534 = vpop.permute.xlu0 %533
        %535 = vrot.lane.b32.xlu0 %v508, 3
        %v536 = vpop.permute.xlu0 %535
        %v537 = vsel %vm310, %v534, 0.0
        %v538 = vsel %vm310, %v536, 0.0
        %539 = vrot.lane.b32.xlu0 %v507, 2
        %v540 = vpop.permute.xlu0 %539
        %541 = vrot.lane.b32.xlu0 %v508, 2
        %v542 = vpop.permute.xlu0 %541
        %v543 = vsel %vm327, %v540, 0.0
        %v544 = vsel %vm327, %v542, 0.0
        %545 = vrot.lane.b32.xlu0 %v507, 1
        %v546 = vpop.permute.xlu0 %545
        %547 = vrot.lane.b32.xlu0 %v508, 1
        %v548 = vpop.permute.xlu0 %547
        %v549 = vsel %vm344, %v546, 0.0
        %v550 = vsel %vm344, %v548, 0.0
        %551 = vrot.lane.b32.xlu0 %v507, 127
        %v552 = vpop.permute.xlu0 %551
        %553 = vrot.lane.b32.xlu0 %v508, 127
        %v554 = vpop.permute.xlu0 %553
        %v555 = vsel %vm376, %v552, 0.0
        %v556 = vsel %vm376, %v554, 0.0
        %557 = vrot.lane.b32.xlu0 %v507, 126
        %v558 = vpop.permute.xlu0 %557
        %559 = vrot.lane.b32.xlu0 %v508, 126
        %v560 = vpop.permute.xlu0 %559
        %v561 = vsel %vm393, %v558, 0.0
        %v562 = vsel %vm393, %v560, 0.0
        %563 = vrot.lane.b32.xlu0 %v507, 125
        %v564 = vpop.permute.xlu0 %563
        %565 = vrot.lane.b32.xlu0 %v508, 125
        %v566 = vpop.permute.xlu0 %565
        %v567 = vsel %vm410, %v564, 0.0
        %v568 = vsel %vm410, %v566, 0.0
        %569 = vrot.lane.b32.xlu0 %v507, 124
        %v570 = vpop.permute.xlu0 %569
        %571 = vrot.lane.b32.xlu0 %v508, 124
        %v572 = vpop.permute.xlu0 %571
        %v573 = vsel %vm427, %v570, 0.0
        %v574 = vsel %vm427, %v572, 0.0
        %575 = vrot.lane.b32.xlu0 %v507, 123
        %v576 = vpop.permute.xlu0 %575
        %577 = vrot.lane.b32.xlu0 %v508, 123
        %v578 = vpop.permute.xlu0 %577
        %v579 = vsel %vm444, %v576, 0.0
        %v580 = vsel %vm444, %v578, 0.0
        %581 = vrot.lane.b32.xlu0 %v507, 122
        %v582 = vpop.permute.xlu0 %581
        %583 = vrot.lane.b32.xlu0 %v508, 122
        %v584 = vpop.permute.xlu0 %583
        %v585 = vsel %vm461, %v582, 0.0
        %v586 = vsel %vm461, %v584, 0.0
        %587 = vrot.lane.b32.xlu0 %v507, 121
        %v588 = vpop.permute.xlu0 %587
        %589 = vrot.lane.b32.xlu0 %v508, 121
        %v590 = vpop.permute.xlu0 %589
        %v591 = vsel %vm478, %v588, 0.0
        %v592 = vsel %vm478, %v590, 0.0
        %v593 = vld [vmem:[#allocation3] sm:$0xff]
        %v594 = vld [vmem:[#allocation3 + $0x8] sm:$0xff]
        %vm595 = vcmask 916480
        %v597 = vsel %vm595, %v594, 0
        %599 = vmatpush.msra.mxu0 %v508
        %600 = vmatpush.msra.mxu0 %v507
        %601 = vmatpush.msra.mxu0 %v550
        %602 = vmatpush.msra.mxu0 %v549
        %603 = vmatpush.msra.mxu0 %v544
        %604 = vmatpush.msra.mxu0 %v543
        %605 = vmatpush.msra.mxu0 %v538
        %606 = vmatpush.msra.mxu0 %v537
        %607 = vmatpush.msra.mxu0 %v532
        %608 = vmatpush.msra.mxu0 %v531
        %609 = vmatpush.msra.mxu0 %v526
        %610 = vmatpush.msra.mxu0 %v525
        %611 = vmatpush.msra.mxu0 %v520
        %612 = vmatpush.msra.mxu0 %v519
        %613 = vmatpush.msra.mxu0 %v514
        %614 = vmatpush.msra.mxu0 %v513
        %615 = vmatmul.f32.gmra.mxu0 %v593
        %v616 = vpop.f32.mrf.mxu0
        %v617 = vadd.f32 0.0, %v616
        %618 = vdwg.mxu0
        %619 = vmatpush.msra.mxu0 0.0
        %620 = vmatpush.msra.mxu0 0.0
        %621 = vmatpush.msra.mxu0 %v592
        %622 = vmatpush.msra.mxu0 %v591
        %623 = vmatpush.msra.mxu0 %v586
        %624 = vmatpush.msra.mxu0 %v585
        %625 = vmatpush.msra.mxu0 %v580
        %626 = vmatpush.msra.mxu0 %v579
        %627 = vmatpush.msra.mxu0 %v574
        %628 = vmatpush.msra.mxu0 %v573
        %629 = vmatpush.msra.mxu0 %v568
        %630 = vmatpush.msra.mxu0 %v567
        %631 = vmatpush.msra.mxu0 %v562
        %632 = vmatpush.msra.mxu0 %v561
        %633 = vmatpush.msra.mxu0 %v556
        %634 = vmatpush.msra.mxu0 %v555
        %635 = vmatmul.f32.gmra.mxu0 %v597
        %v636 = vpop.f32.mrf.mxu0
        %v637 = vadd.f32 %v617, %v636
        %638 = vdwg.mxu0
        %v639 = vld [vmem:[#allocation2] sm:$0x1]
        %641 = vset.pattern.permute.xlu0 0
        %642 = vperm.xlu0 %641, %v639
        %v643 = vpop.permute.xlu0 %642
        %v645 = vperm.slane %v643, 0
        %v646 = vadd.f32 %v637, %v645
        %647 = vst [vmem:[%s229] sm:$0x1] %v646
        %s648 = sand.u32 %s140, 1
        %s649 = scalar_lea.sflag [#allocation5], %s648
        %s650 = sand.u32 %s140, 1
        %s651 = scalar_lea.vmem [#allocation6], %s650
        // Predicated region
        $region45: #{tpu_custom_call.1} parent=39 // pred_check
          %p652 = pneg %p150
        $region46: #{tpu_custom_call.1} parent=39 // pred_check_branch
          %654 = sbr.rel (%p652) target = $region48
        $region47: #{tpu_custom_call.1} parent=39 // pred_region
          %656 = vsyncadd %s649, 0
          %s657 = scalar_lea.hbm %s5, %s22
          %s659 = sshll.u32 %s651, 4
          %s660 = int_to_ptr.vmem [resolvable:$true] %s659
          %s661 = sshll.u32 %s657, 4
          %s662 = int_to_ptr.hbm [resolvable:$true] %s661
          %664 = dma.vmem_to_hbm [thread:$0]  %s660, 16, %s662, %s649
        $region48: #{tpu_custom_call.1} parent=39 // pred_fallthru
          _
      $region40: #{tpu_custom_call.1} parent=5 // pred_fallthru
        _
      %p665 = scmp.le.s32.totalorder 2, %s17
      // Predicated region
      $region49: #{tpu_custom_call.1} parent=5 // pred_check
        %p666 = pneg %p665
      $region50: #{tpu_custom_call.1} parent=5 // pred_check_branch
        %668 = sbr.rel (%p666) target = $region52
      $region51: #{tpu_custom_call.1} parent=5 // pred_region
        %s669 = ssub.s32 %s17, 2
        // Predicated region
        $region53: #{tpu_custom_call.1} parent=51 // pred_check
          %p670 = pneg %p156
        $region54: #{tpu_custom_call.1} parent=51 // pred_check_branch
          %672 = sbr.rel (%p670) target = $region56
        $region55: #{tpu_custom_call.1} parent=51 // pred_region
          %s673 = sand.u32 %s141, 1
          %s674 = scalar_lea.sflag [#allocation5], %s673
          %s675 = sand.u32 %s141, 1
          %s676 = scalar_lea.vmem [#allocation6], %s675
          %678 = dma.done %s674, 16
        $region56: #{tpu_custom_call.1} parent=51 // pred_fallthru
          _
      $region52: #{tpu_custom_call.1} parent=5 // pred_fallthru
        _
    $region6: #{tpu_custom_call.1} parent=1 // loop_footer
      %s21 = sadd.s32 1, %s17
    $region7: #{tpu_custom_call.1} parent=1 // loop_footer_branch
      %16 = sbr.rel target = $region3
    $region8: #{tpu_custom_call.1} parent=1 // loop_exit
      _
    %679 = vsyncpa [#allocation4], 1
    %s680 = scalar_lea.sflag [#allocation4], 1
    %681 = vsyncpa %s680, 1
    %682 = vsyncpa [#allocation5], 1
    %s683 = scalar_lea.sflag [#allocation5], 1
    %684 = vsyncpa %s683, 1

</llo_original>
